<compile_context>
chip_gen: v7x
topology: tpu7x:2x2x1
jax: 0.10.0
libtpu: 0.0.40
codegen_flags: <defaults>
</compile_context>

<pallas_src>
import jax
import jax.numpy as jnp
from jax.experimental import pallas as pl
from jax.experimental.pallas import tpu as pltpu


def _keypoint_loss_kernel(slab_ref, area_ref, inv_sig_ref, out_ref):
    # slab_ref    : (5K, T)  rows [px(K), py(K), gx(K), gy(K), mask(K)]  (f32 or bf16)
    # area_ref    : (1, T)   f32
    # inv_sig_ref : (K, 1)   f32, precomputed 1 / (8 * sigma^2)  (grid-invariant)
    # out_ref     : (1, T)   f32 per-instance partial sums (already reduced over K)
    k = inv_sig_ref.shape[0]
    px = slab_ref[pl.ds(0 * k, k), :].astype(jnp.float32)
    py = slab_ref[pl.ds(1 * k, k), :].astype(jnp.float32)
    gx = slab_ref[pl.ds(2 * k, k), :].astype(jnp.float32)
    gy = slab_ref[pl.ds(3 * k, k), :].astype(jnp.float32)
    m = slab_ref[pl.ds(4 * k, k), :].astype(jnp.float32)
    area = area_ref[...]
    inv_sig = inv_sig_ref[...]

    dx = px - gx
    dy = py - gy
    d = dx * dx + dy * dy                                               # (K, T)

    # kpt_loss_factor = K / (count_nonzero(mask, axis=K) + 1e-9)
    cnt = jnp.sum((m != 0.0).astype(jnp.float32), axis=0, keepdims=True)  # (1, T)
    klf = jnp.float32(k) / (cnt + 1e-9)                                 # exact divide

    # e = d / ((2*sigma)^2 * (area + 1e-9) * 2) = d * (1/(8*sigma^2)) / (area + 1e-9)
    e = d * inv_sig / (area + 1e-9)                                     # (K, T)

    s = jnp.sum((1.0 - jnp.exp(-e)) * m, axis=0, keepdims=True)         # (1, T)
    out_ref[...] = klf * s


def keypoint_loss(pred_kpts, gt_kpts, kpt_mask, area, sigmas, *,
                  tile_n=8192, pack_dtype=jnp.float32):
    """Pallas-backed KeypointLoss.forward.

    pred_kpts, gt_kpts : (N, K, >=2)
    kpt_mask           : (N, K)
    area               : (N, 1) or (N,)
    sigmas             : (K,)
    pack_dtype         : dtype of the packed pred/gt/mask slab (f32 or bf16).
    returns scalar float32
    """
    pred_kpts = jnp.asarray(pred_kpts, jnp.float32)
    gt_kpts = jnp.asarray(gt_kpts, jnp.float32)
    kpt_mask = jnp.asarray(kpt_mask, jnp.float32)
    area = jnp.asarray(area, jnp.float32)
    sigmas = jnp.asarray(sigmas, jnp.float32)

    n, k = kpt_mask.shape

    # ---- tile choice ------------------------------------------------------
    n128 = -(-n // 128) * 128                      # lanes, rounded up to 128
    tile_n = max(128, min(int(tile_n), n128))
    # v7x: keep the "parallel" grid axis at >= 2 steps so both TensorCores
    # stream (harmless single extra ~0.35us step on single-TC v5e/v6e).
    if n128 >= 256:
        half_rounded = -(-(n128 // 2) // 128) * 128
        tile_n = min(tile_n, half_rounded)

    n_pad = -(-n // tile_n) * tile_n
    pad = n_pad - n
    num_tiles = n_pad // tile_n

    # ---- pack ONE lane-dense slab (single XLA fusion: one read per input,
    # one write of the slab; the pad/cast fuse into the same pass) ----------
    slab = jnp.concatenate(
        [pred_kpts[..., 0], pred_kpts[..., 1],
         gt_kpts[..., 0], gt_kpts[..., 1],
         kpt_mask],
        axis=1,                                    # (N, 5K)
    ).T.astype(pack_dtype)                         # (5K, N)
    area_row = area.reshape(1, n)                  # (1, N) stays f32 for precision
    if pad:
        # mask pads to 0 -> padded lanes contribute exactly 0; area pads to 1
        # so no division hazard.
        slab = jnp.pad(slab, ((0, 0), (0, pad)))
        area_row = jnp.pad(area_row, ((0, 0), (0, pad)), constant_values=1.0)

    inv_sig = (1.0 / (8.0 * sigmas * sigmas)).reshape(k, 1).astype(jnp.float32)

    per_instance = pl.pallas_call(
        _keypoint_loss_kernel,
        out_shape=jax.ShapeDtypeStruct((1, n_pad), jnp.float32),
        grid_spec=pltpu.PrefetchScalarGridSpec(
            num_scalar_prefetch=0,
            grid=(num_tiles,),
            in_specs=[
                pl.BlockSpec((5 * k, tile_n), lambda i: (0, i)),  # packed slab
                pl.BlockSpec((1, tile_n), lambda i: (0, i)),      # area
                pl.BlockSpec((k, 1), lambda i: (0, 0)),           # 1/(8*sigma^2)
            ],
            out_specs=pl.BlockSpec((1, tile_n), lambda i: (0, i)),
        ),
        compiler_params=pltpu.CompilerParams(
            dimension_semantics=("parallel",),
            vmem_limit_bytes=32 * 1024 * 1024,
        ),
    )(slab, area_row, inv_sig)

    # Tiny final reduction: divide by the true (unpadded) N*K, matching
    # torch's .mean() over the (N, K) loss matrix.
    return jnp.sum(per_instance) / jnp.float32(n * k)


def _reference(pred_kpts, gt_kpts, kpt_mask, area, sigmas):
    d = (pred_kpts[..., 0] - gt_kpts[..., 0]) ** 2 + (pred_kpts[..., 1] - gt_kpts[..., 1]) ** 2
    kpt_loss_factor = kpt_mask.shape[1] / (jnp.sum(kpt_mask != 0, axis=1) + 1e-9)
    e = d / ((2 * sigmas) ** 2 * (area.reshape(-1, 1) + 1e-9) * 2)
    return jnp.mean(kpt_loss_factor.reshape(-1, 1) * ((1 - jnp.exp(-e)) * kpt_mask))


if __name__ == "__main__":
    key = jax.random.PRNGKey(0)

    def make_case(case_key, n, k):
        k1, k2, k3, k4 = jax.random.split(case_key, 4)
        pred = jax.random.normal(k1, (n, k, 2), dtype=jnp.float32) * 4.0
        gt = jax.random.normal(k2, (n, k, 2), dtype=jnp.float32) * 4.0
        mask = (jax.random.uniform(k3, (n, k)) > 0.3).astype(jnp.float32)
        ar = jax.random.uniform(k4, (n, 1), minval=10.0, maxval=100.0).astype(jnp.float32)
        sig = jnp.linspace(0.025, 0.107, k).astype(jnp.float32)   # synthetic OKS-style sigmas
        return pred, gt, mask, ar, sig

    key1, key2 = jax.random.split(key)

    # f32 slab: single tile (padded to 128 lanes) and multi-tile + ragged tail.
    for case_key, n, k in [(key1, 8, 16), (key2, 300, 17)]:
        pred, gt, mask, ar, sig = make_case(case_key, n, k)
        loss = keypoint_loss(pred, gt, mask, ar, sig)
        jax.block_until_ready(loss)
        ref = _reference(pred, gt, mask, ar, sig)
        assert jnp.allclose(loss, ref, rtol=1e-4, atol=1e-7), (n, k, float(loss), float(ref))

    # bf16 slab (halves pred/gt/mask HBM bytes); compare against a reference fed
    # the same bf16-rounded pred/gt so only the kernel itself is being checked.
    pred, gt, mask, ar, sig = make_case(key2, 300, 17)
    loss_bf16 = keypoint_loss(pred, gt, mask, ar, sig, pack_dtype=jnp.bfloat16)
    jax.block_until_ready(loss_bf16)
    pred_r = pred.astype(jnp.bfloat16).astype(jnp.float32)
    gt_r = gt.astype(jnp.bfloat16).astype(jnp.float32)
    ref_bf16 = _reference(pred_r, gt_r, mask, ar, sig)
    assert jnp.allclose(loss_bf16, ref_bf16, rtol=1e-4, atol=1e-7), (float(loss_bf16), float(ref_bf16))

    print("KERNEL_OK")
</pallas_src>

<mosaic_0001>
module attributes {stable_mosaic.version = 11 : i64} {
  func.func @_keypoint_loss_kernel(%arg0: i32, %arg1: memref<80x128xf32, #tpu.memory_space<vmem>>, %arg2: memref<1x128xf32, #tpu.memory_space<vmem>>, %arg3: memref<16x1xf32, #tpu.memory_space<vmem>>, %arg4: memref<1x128xf32, #tpu.memory_space<vmem>>) attributes {dimension_semantics = [#tpu.dimension_semantics<parallel>], iteration_bounds = array<i64: 1>, scalar_prefetch = 0 : i64, scratch_operands = 0 : i64, tpu.core_type = #tpu.core_type<tc>, window_params = [{transform_indices = @transform_0, window_bounds = array<i64: 80, 128>}, {transform_indices = @transform_1, window_bounds = array<i64: 1, 128>}, {pipeline_mode = #tpu.pipeline_mode<synchronous>, transform_indices = @transform_2, window_bounds = array<i64: 16, 1>}, {transform_indices = @transform_3, window_bounds = array<i64: 1, 128>}]} {
    %c0 = arith.constant 0 : index
    %c0_0 = arith.constant 0 : index
    %0 = vector.load %arg1[%c0, %c0_0] : memref<80x128xf32, #tpu.memory_space<vmem>>, vector<16x128xf32>
    %c16 = arith.constant 16 : index
    %c0_1 = arith.constant 0 : index
    %1 = vector.load %arg1[%c16, %c0_1] : memref<80x128xf32, #tpu.memory_space<vmem>>, vector<16x128xf32>
    %c32 = arith.constant 32 : index
    %c0_2 = arith.constant 0 : index
    %2 = vector.load %arg1[%c32, %c0_2] : memref<80x128xf32, #tpu.memory_space<vmem>>, vector<16x128xf32>
    %c48 = arith.constant 48 : index
    %c0_3 = arith.constant 0 : index
    %3 = vector.load %arg1[%c48, %c0_3] : memref<80x128xf32, #tpu.memory_space<vmem>>, vector<16x128xf32>
    %c64 = arith.constant 64 : index
    %c0_4 = arith.constant 0 : index
    %4 = vector.load %arg1[%c64, %c0_4] : memref<80x128xf32, #tpu.memory_space<vmem>>, vector<16x128xf32>
    %c0_5 = arith.constant 0 : index
    %c0_6 = arith.constant 0 : index
    %5 = vector.load %arg2[%c0_5, %c0_6] : memref<1x128xf32, #tpu.memory_space<vmem>>, vector<1x128xf32>
    %c0_7 = arith.constant 0 : index
    %c0_8 = arith.constant 0 : index
    %6 = vector.load %arg3[%c0_7, %c0_8] : memref<16x1xf32, #tpu.memory_space<vmem>>, vector<16x1xf32>
    %7 = arith.subf %0, %2 : vector<16x128xf32>
    %8 = arith.subf %1, %3 : vector<16x128xf32>
    %9 = arith.mulf %7, %7 : vector<16x128xf32>
    %10 = arith.mulf %8, %8 : vector<16x128xf32>
    %11 = arith.addf %9, %10 : vector<16x128xf32>
    %cst = arith.constant 0.000000e+00 : f32
    %12 = vector.broadcast %cst : f32 to vector<16x128xf32>
    %13 = arith.cmpf one, %4, %12 : vector<16x128xf32>
    %14 = arith.extui %13 : vector<16x128xi1> to vector<16x128xi32>
    %15 = arith.sitofp %14 : vector<16x128xi32> to vector<16x128xf32>
    %cst_9 = arith.constant dense<0.000000e+00> : vector<128xf32>
    %16 = vector.multi_reduction <add>, %15, %cst_9 [0] : vector<16x128xf32> to vector<128xf32>
    %17 = vector.shape_cast %16 : vector<128xf32> to vector<1x128xf32>
    %cst_10 = arith.constant 9.99999971E-10 : f32
    %18 = vector.broadcast %cst_10 : f32 to vector<1x128xf32>
    %19 = arith.addf %17, %18 : vector<1x128xf32>
    %cst_11 = arith.constant 1.600000e+01 : f32
    %20 = vector.broadcast %cst_11 : f32 to vector<1x128xf32>
    %21 = arith.divf %20, %19 : vector<1x128xf32>
    %22 = vector.broadcast %6 : vector<16x1xf32> to vector<16x128xf32>
    %23 = arith.mulf %11, %22 : vector<16x128xf32>
    %cst_12 = arith.constant 9.99999971E-10 : f32
    %24 = vector.broadcast %cst_12 : f32 to vector<1x128xf32>
    %25 = arith.addf %5, %24 : vector<1x128xf32>
    %26 = vector.broadcast %25 : vector<1x128xf32> to vector<16x128xf32>
    %27 = arith.divf %23, %26 : vector<16x128xf32>
    %cst_13 = arith.constant 0.000000e+00 : f32
    %28 = vector.broadcast %cst_13 : f32 to vector<16x128xf32>
    %29 = arith.subf %28, %27 : vector<16x128xf32>
    %30 = math.exp %29 : vector<16x128xf32>
    %cst_14 = arith.constant 1.000000e+00 : f32
    %31 = vector.broadcast %cst_14 : f32 to vector<16x128xf32>
    %32 = arith.subf %31, %30 : vector<16x128xf32>
    %33 = arith.mulf %32, %4 : vector<16x128xf32>
    %cst_15 = arith.constant dense<0.000000e+00> : vector<128xf32>
    %34 = vector.multi_reduction <add>, %33, %cst_15 [0] : vector<16x128xf32> to vector<128xf32>
    %35 = vector.shape_cast %34 : vector<128xf32> to vector<1x128xf32>
    %36 = arith.mulf %21, %35 : vector<1x128xf32>
    %c0_16 = arith.constant 0 : index
    %c0_17 = arith.constant 0 : index
    %37 = vector.load %arg4[%c0_16, %c0_17] : memref<1x128xf32, #tpu.memory_space<vmem>>, vector<1x128xf32>
    tpu.vector_store %arg4[%c0_16, %c0_17], %36 {strides = array<i32>} : memref<1x128xf32, #tpu.memory_space<vmem>>, vector<1x128xf32>,
    return
  }
  func.func @transform_0(%arg0: i32) -> (i32, i32) {
    %c0_i32 = arith.constant 0 : i32
    %c0_i32_0 = arith.constant 0 : i32
    return %c0_i32, %arg0 : i32, i32
  }
  func.func @transform_1(%arg0: i32) -> (i32, i32) {
    %c0_i32 = arith.constant 0 : i32
    %c0_i32_0 = arith.constant 0 : i32
    return %c0_i32, %arg0 : i32, i32
  }
  func.func @transform_2(%arg0: i32) -> (i32, i32) {
    %c0_i32 = arith.constant 0 : i32
    %c0_i32_0 = arith.constant 0 : i32
    %c0_i32_1 = arith.constant 0 : i32
    return %c0_i32, %c0_i32_0 : i32, i32
  }
  func.func @transform_3(%arg0: i32) -> (i32, i32) {
    %c0_i32 = arith.constant 0 : i32
    %c0_i32_0 = arith.constant 0 : i32
    return %c0_i32, %arg0 : i32, i32
  }
}

</mosaic_0001>

<llo_original>
// kernel: tpu_custom_call.1
$region0: #{tpu_custom_call.1}
  #allocation0 [shape = 'u32[]', space=smem, size = 0x4, offset = 0x4, fixed_abs, tag = 'smem constant byte address 0x4 - core index']
  #allocation1 [shape = 'u32[144,128]{1,0:T(1,128)}', space=vmem, size = 0x12000, scoped, tag = 'internal scratch']
  %s0 = inlined_call_operand.hbm [shape: f32[80,128], index: 0, kind: input, shape index: {}]
  %s1 = inlined_call_operand.vmem [shape: f32[1,128], index: 1, kind: input, shape index: {}]
  %s2 = inlined_call_operand.vmem [shape: f32[16,1], index: 2, kind: input, shape index: {}]
  %s3 = inlined_call_operand.hbm [shape: f32[1,128], index: 3, kind: output, shape index: {}]
  %s4 = sld [smem:[#allocation0]]
  $region26: #{tpu_custom_call.1} parent=0
    _
  %s6 = ssub.s32 1, %s4
  %s7 = scalar_select 0, %s6, %s4
  $region1: #{tpu_custom_call.1} parent=0
    #allocation2 [shape = 'u8[40960]{0}', space=vmem, size = 0xa000, scoped, tag = 'input window, operand 0, single buffered']
    #allocation3 [shape = 's32[1]{0}', space=sflag, size = 0x4, scoped, tag = 'scoped memory for tpu_custom_call.1']
    #allocation4 [shape = 's32[1]{0}', space=sflag, size = 0x4, scoped, tag = 'scoped memory for tpu_custom_call.1']
    #allocation5 [shape = 'u8[512]{0}', space=vmem, size = 0x400, scoped, tag = 'output window, operand 0, single buffered']
    %8 = vsyncpa [#allocation3], 0
    %9 = vsyncpa [#allocation4], 0
    // Predicated region
    $region2: #{tpu_custom_call.1} parent=1 // pred_check
      _
    $region3: #{tpu_custom_call.1} parent=1 // pred_check_branch
      %11 = sbr.rel (0) target = $region5
    $region4: #{tpu_custom_call.1} parent=1 // pred_region
      %s13 = ssub.s32 1280, 1280
      %14 = vsyncadd [#allocation3], %s13
      %s15 = sshll.u32 [#allocation2], 4
      %s16 = int_to_ptr.vmem [resolvable:$true] %s15
      %21 = dma.hbm_to_vmem [thread:$0]  %s0, 1280, %s16, [#allocation3], 128, 128, 8
    $region5: #{tpu_custom_call.1} parent=1 // pred_fallthru
      _
    // Predicated region
    $region6: #{tpu_custom_call.1} parent=1 // pred_check
      _
    $region7: #{tpu_custom_call.1} parent=1 // pred_check_branch
      %23 = sbr.rel (0) target = $region9
    $region8: #{tpu_custom_call.1} parent=1 // pred_region
      _
    $region9: #{tpu_custom_call.1} parent=1 // pred_fallthru
      _
    // Predicated region
    $region10: #{tpu_custom_call.1} parent=1 // pred_check
      _
    $region11: #{tpu_custom_call.1} parent=1 // pred_check_branch
      %25 = sbr.rel (0) target = $region13
    $region12: #{tpu_custom_call.1} parent=1 // pred_region
      _
    $region13: #{tpu_custom_call.1} parent=1 // pred_fallthru
      _
    // Predicated region
    $region14: #{tpu_custom_call.1} parent=1 // pred_check
      _
    $region15: #{tpu_custom_call.1} parent=1 // pred_check_branch
      %27 = sbr.rel (0) target = $region17
    $region16: #{tpu_custom_call.1} parent=1 // pred_region
      %28 = dma.done [#allocation3], 1280
    $region17: #{tpu_custom_call.1} parent=1 // pred_fallthru
      _
    %v29 = vld [vmem:[#allocation2] sm:$0xff]
    %v30 = vld [vmem:[#allocation2 + $0x8] sm:$0xff]
    %v31 = vld [vmem:[#allocation2 + $0x10] sm:$0xff]
    %v32 = vld [vmem:[#allocation2 + $0x18] sm:$0xff]
    %v33 = vld [vmem:[#allocation2 + $0x20] sm:$0xff]
    %v34 = vld [vmem:[#allocation2 + $0x28] sm:$0xff]
    %v35 = vld [vmem:[#allocation2 + $0x30] sm:$0xff]
    %v36 = vld [vmem:[#allocation2 + $0x38] sm:$0xff]
    %v37 = vld [vmem:[#allocation2 + $0x40] sm:$0xff]
    %v38 = vld [vmem:[#allocation2 + $0x48] sm:$0xff]
    %v39 = vld [vmem:[%s1] sm:$0x1]
    %v40 = vld [vmem:[%s2] sm:$0xff]
    %v41 = vld [vmem:[%s2 + $0x8] sm:$0xff]
    %v42 = vsub.f32 %v29, %v33
    %v43 = vsub.f32 %v30, %v34
    %v44 = vsub.f32 %v31, %v35
    %v45 = vsub.f32 %v32, %v36
    %v46 = vmul.f32 %v42, %v42
    %v47 = vmul.f32 %v43, %v43
    %v48 = vmul.f32 %v44, %v44
    %v49 = vmul.f32 %v45, %v45
    %v50 = vadd.f32 %v46, %v48
    %v51 = vadd.f32 %v47, %v49
    %vm52 = vcmp.ne.f32.partialorder %v37, 0.0
    %vm53 = vcmp.ne.f32.partialorder %v38, 0.0
    %v54 = vsel %vm52, 1, 0
    %v55 = vsel %vm53, 1, 0
    %v56 = vcvt.s32.f32 %v54
    %v57 = vcvt.s32.f32 %v55
    %v58 = vadd.f32 %v56, %v57
    %v59 = vrot.slane %v58, 4
    %v60 = vadd.f32 %v58, %v59
    %v61 = vrot.slane %v60, 2
    %v62 = vadd.f32 %v60, %v61
    %v63 = vrot.slane %v62, 1
    %v64 = vadd.f32 %v62, %v63
    %v65 = vadd.f32 %v64, 1e-09
    %v66 = vrcp.pop %v65
    %v67 = vmul.f32 16.0, %v66
    %69 = vset.pattern.permute.xlu0 0
    %70 = vperm.xlu0 %69, %v40
    %v71 = vpop.permute.xlu0 %70
    %74 = vset.pattern.permute.xlu0 0
    %75 = vperm.xlu0 %74, %v41
    %v76 = vpop.permute.xlu0 %75
    %v78 = vmul.f32 %v50, %v71
    %v79 = vmul.f32 %v51, %v76
    %v80 = vadd.f32 %v39, 1e-09
    %v82 = vlaneseq
    %v83 = vshrl.u32 %v82, 7
    %v84 = vsub.s32 0, %v83
    %v85 = vrot.slane %v80, %v84
    %v87 = vrcp.pop %v85
    %v88 = vmul.f32 %v78, %v87
    %v89 = vmul.f32 %v79, %v87
    %v90 = vsub.f32 0.0, %v88
    %v91 = vsub.f32 0.0, %v89
    %v92 = vmul.f32 %v90, 1.442695
    %v93 = vpow.pop %v92
    %v94 = vmul.f32 %v91, 1.442695
    %v95 = vpow.pop %v94
    %v96 = vsub.f32 1.0, %v93
    %v97 = vsub.f32 1.0, %v95
    %v98 = vmul.f32 %v96, %v37
    %v99 = vmul.f32 %v97, %v38
    %v100 = vadd.f32 %v98, %v99
    %v101 = vrot.slane %v100, 4
    %v102 = vadd.f32 %v100, %v101
    %v103 = vrot.slane %v102, 2
    %v104 = vadd.f32 %v102, %v103
    %v105 = vrot.slane %v104, 1
    %v106 = vadd.f32 %v104, %v105
    %v107 = vmul.f32 %v67, %v106
    %108 = vst [vmem:[#allocation5] sm:$0x1] %v107
    // Predicated region
    $region18: #{tpu_custom_call.1} parent=1 // pred_check
      _
    $region19: #{tpu_custom_call.1} parent=1 // pred_check_branch
      %110 = sbr.rel (0) target = $region21
    $region20: #{tpu_custom_call.1} parent=1 // pred_region
      %s112 = ssub.s32 16, 16
      %113 = vsyncadd [#allocation4], %s112
      %s115 = sshll.u32 [#allocation5], 4
      %s116 = int_to_ptr.vmem [resolvable:$true] %s115
      %118 = dma.vmem_to_hbm [thread:$0]  %s116, 16, %s3, [#allocation4]
    $region21: #{tpu_custom_call.1} parent=1 // pred_fallthru
      _
    // Predicated region
    $region22: #{tpu_custom_call.1} parent=1 // pred_check
      _
    $region23: #{tpu_custom_call.1} parent=1 // pred_check_branch
      %120 = sbr.rel (0) target = $region25
    $region24: #{tpu_custom_call.1} parent=1 // pred_region
      %121 = dma.done [#allocation4], 16
    $region25: #{tpu_custom_call.1} parent=1 // pred_fallthru
      _
    %122 = vsyncpa [#allocation3], 1
    %123 = vsyncpa [#allocation4], 1

</llo_original>
